<compile_context>
chip_gen: v6e
topology: v6e:2x2x1
jax: 0.10.0
libtpu: 0.0.40
codegen_flags: <defaults>
</compile_context>

<pallas_src>
import math

import jax
import jax.numpy as jnp
from jax.experimental import pallas as pl
from jax.experimental.pallas import tpu as pltpu


# ------------------------------------------------------------------ pe buffer
def _build_pe(d_model: int, max_len: int = 500) -> jnp.ndarray:
    """Positional-encoding buffer identical to the PyTorch __init__ (f32)."""
    position = jnp.arange(0, max_len, dtype=jnp.float32)[:, None]          # [L, 1]
    div_term = jnp.exp(
        jnp.arange(0, d_model, 2, dtype=jnp.float32)
        * -(math.log(10000.0) / d_model)
    )                                                                      # [ceil(D/2)]
    angles = position * div_term                                           # [L, ceil(D/2)]
    pe = jnp.zeros((max_len, d_model), dtype=jnp.float32)
    pe = pe.at[:, 0::2].set(jnp.sin(angles)[:, : (d_model + 1) // 2])
    # Odd d_model: truncate the cos term (the PyTorch module would error here).
    pe = pe.at[:, 1::2].set(jnp.cos(angles)[:, : d_model // 2])
    return pe[None, :, :]                                                  # [1, L, D]


# ------------------------------------------------------------------ kernel
def _add_pe_kernel(x_ref, pe_ref, o_ref):
    # 3-D path: x (tb, ts, D) + pe (1, ts, D)   (broadcast over batch)
    # flat path: x (tb, tc)   + pe (1, tc)      (broadcast over sublanes)
    # Add runs in the promoted dtype (f32 if pe is f32), output cast per tile.
    o_ref[...] = (x_ref[...] + pe_ref[...]).astype(o_ref.dtype)


# ------------------------------------------------------------------ helpers
_PER_BUFFER_BYTES = 4 * 1024 * 1024   # per-block VMEM budget per operand
_VMEM_LIMIT_BYTES = 32 * 1024 * 1024  # 3 operands x 2 buffers x 4 MiB = 24 MiB
_TINY_BYTES = 256 * 1024              # below this, a fused XLA add wins


def _round_down(x: int, m: int) -> int:
    return (x // m) * m


def _round_up(x: int, m: int) -> int:
    return ((x + m - 1) // m) * m


def _sublane_min(dtype) -> int:
    """Minimum sublane tile for a packed dtype: 8 f32, 16 bf16, 32 int8/fp8."""
    return max(8, 32 // jnp.dtype(dtype).itemsize)


# ------------------------------------------------------------------ 3D path (D % 128 == 0)
def _pos_enc_tiled(x: jnp.ndarray, pe: jnp.ndarray) -> jnp.ndarray:
    B, S, D = x.shape
    per_row_bytes = D * max(jnp.dtype(x.dtype).itemsize, jnp.dtype(pe.dtype).itemsize)
    sub = _sublane_min(x.dtype)

    # Rows of one batch element per block (dtype-aligned), capped; full-S block
    # is always legal regardless of alignment.
    rows = _round_down(max(sub, _PER_BUFFER_BYTES // per_row_bytes), sub)
    ts = S if rows >= S else min(rows, _round_down(1024, sub))

    # Fold batch elements into the block while staying inside the budget.
    tb = max(1, min(B, _PER_BUFFER_BYTES // max(1, ts * per_row_bytes)))

    grid = (pl.cdiv(S, ts), pl.cdiv(B, tb))   # seq OUTER -> pe block reused across batch

    return pl.pallas_call(
        _add_pe_kernel,
        out_shape=jax.ShapeDtypeStruct((B, S, D), x.dtype),
        grid_spec=pltpu.PrefetchScalarGridSpec(
            num_scalar_prefetch=0,
            grid=grid,
            in_specs=[
                pl.BlockSpec((tb, ts, D), lambda s, b: (b, s, 0)),   # x tile (batch folded)
                pl.BlockSpec((1, ts, D), lambda s, b: (0, s, 0)),    # pe windowed, batch-invariant
            ],
            out_specs=pl.BlockSpec((tb, ts, D), lambda s, b: (b, s, 0)),
        ),
        compiler_params=pltpu.CompilerParams(
            dimension_semantics=("parallel", "parallel"),
            vmem_limit_bytes=_VMEM_LIMIT_BYTES,
        ),
    )(x, pe)


# ------------------------------------------------------------------ flat path (D % 128 != 0)
def _pos_enc_flat(x: jnp.ndarray, pe: jnp.ndarray) -> jnp.ndarray:
    B, S, D = x.shape
    max_len = pe.shape[1]
    flat = S * D

    x2 = x.reshape(B, flat)                    # contiguous reshape
    pe2 = pe.reshape(1, max_len * D)           # flat pe; first S*D entries match x layout

    itemsize = max(jnp.dtype(x.dtype).itemsize, jnp.dtype(pe.dtype).itemsize)
    sub = _sublane_min(x.dtype)

    # Tile the batch (sublane) dim too: whole-B block for small B, otherwise
    # dtype-aligned 256-row chunks (256 is a multiple of 8/16/32).
    max_rows = _round_down(256, sub)
    tb = B if B <= max_rows else max_rows

    # Lane-dense block width (multiple of 128) within the per-buffer budget.
    tc = _round_down(max(128, _PER_BUFFER_BYTES // max(1, tb * itemsize)), 128)
    tc = min(tc, _round_up(flat, 128))

    grid = (pl.cdiv(flat, tc), pl.cdiv(B, tb))  # lane axis OUTER -> pe block reused

    out = pl.pallas_call(
        _add_pe_kernel,
        out_shape=jax.ShapeDtypeStruct((B, flat), x.dtype),
        grid_spec=pltpu.PrefetchScalarGridSpec(
            num_scalar_prefetch=0,
            grid=grid,
            in_specs=[
                pl.BlockSpec((tb, tc), lambda c, b: (b, c)),   # x tile
                pl.BlockSpec((1, tc), lambda c, b: (0, c)),    # pe: broadcast over sublanes
            ],
            out_specs=pl.BlockSpec((tb, tc), lambda c, b: (b, c)),
        ),
        compiler_params=pltpu.CompilerParams(
            dimension_semantics=("parallel", "parallel"),
            vmem_limit_bytes=_VMEM_LIMIT_BYTES,
        ),
    )(x2, pe2)
    return out.reshape(B, S, D)


# ------------------------------------------------------------------ public entry
def positional_encoding(x: jnp.ndarray, pe: jnp.ndarray, *, force_kernel: bool = False) -> jnp.ndarray:
    """x: [B, S, D]; pe: [1, max_len, D] (f32 buffer). Returns x + pe[:, :S]."""
    B, S, D = x.shape
    assert pe.shape[0] == 1 and pe.shape[2] == D and S <= pe.shape[1]

    # Tiny inputs: launch overhead dominates any kernel -> fused XLA add.
    if not force_kernel and x.size * jnp.dtype(x.dtype).itemsize < _TINY_BYTES:
        return (x + pe[:, :S, :]).astype(x.dtype)

    if D % 128 == 0:
        return _pos_enc_tiled(x, pe)
    return _pos_enc_flat(x, pe)


# ------------------------------------------------------------------ demo / check
if __name__ == "__main__":
    max_len = 500
    key = jax.random.PRNGKey(0)
    k1, k2, k3 = jax.random.split(key, 3)

    # Case 1: d_model < 128 (module-typical small hidden) -> lane-dense flat path.
    B, S, D = 2, 8, 32
    x1 = jax.random.normal(k1, (B, S, D), dtype=jnp.float32)
    pe1 = _build_pe(D, max_len)
    out1 = jax.block_until_ready(positional_encoding(x1, pe1, force_kernel=True))
    ref1 = x1 + pe1[:, :S, :]
    assert out1.shape == (B, S, D)
    assert jnp.allclose(out1, ref1, atol=1e-6), "flat-path mismatch vs reference"

    # Case 1b: same shapes through the tiny-input XLA dispatch (default path).
    out1b = jax.block_until_ready(positional_encoding(x1, pe1))
    assert jnp.allclose(out1b, ref1, atol=1e-6), "tiny-dispatch mismatch vs reference"

    # Case 2: lane-aligned d_model (multiple of 128) -> batch-folded 3-D path.
    B2, S2, D2 = 2, 16, 128
    x2 = jax.random.normal(k2, (B2, S2, D2), dtype=jnp.float32)
    pe2 = _build_pe(D2, max_len)
    out2 = jax.block_until_ready(positional_encoding(x2, pe2, force_kernel=True))
    ref2 = x2 + pe2[:, :S2, :]
    assert out2.shape == (B2, S2, D2)
    assert jnp.allclose(out2, ref2, atol=1e-6), "tiled-path mismatch vs reference"

    # Case 3: bf16 activations + f32 pe -> add promoted to f32 in-kernel
    # (matches PyTorch f32-buffer + half-input promotion), output cast to bf16.
    B3, S3, D3 = 4, 24, 128
    x3 = jax.random.normal(k3, (B3, S3, D3), dtype=jnp.float32).astype(jnp.bfloat16)
    pe3 = _build_pe(D3, max_len)
    out3 = jax.block_until_ready(positional_encoding(x3, pe3, force_kernel=True))
    ref3 = (x3.astype(jnp.float32) + pe3[:, :S3, :]).astype(jnp.bfloat16)
    assert out3.shape == (B3, S3, D3)
    assert jnp.allclose(out3.astype(jnp.float32), ref3.astype(jnp.float32), atol=1e-2), \
        "bf16 tiled-path mismatch vs reference"

    print("KERNEL_OK")
</pallas_src>

<mosaic_0001>
module attributes {stable_mosaic.version = 11 : i64} {
  func.func @_add_pe_kernel(%arg0: i32, %arg1: i32, %arg2: memref<2x256xf32, #tpu.memory_space<vmem>>, %arg3: memref<1x256xf32, #tpu.memory_space<vmem>>, %arg4: memref<2x256xf32, #tpu.memory_space<vmem>>) attributes {dimension_semantics = [#tpu.dimension_semantics<parallel>, #tpu.dimension_semantics<parallel>], iteration_bounds = array<i64: 1, 1>, scalar_prefetch = 0 : i64, scratch_operands = 0 : i64, tpu.core_type = #tpu.core_type<tc>, window_params = [{transform_indices = @transform_0, window_bounds = array<i64: 2, 256>}, {transform_indices = @transform_1, window_bounds = array<i64: 1, 256>}, {transform_indices = @transform_2, window_bounds = array<i64: 2, 256>}]} {
    %c0 = arith.constant 0 : index
    %c0_0 = arith.constant 0 : index
    %0 = vector.load %arg2[%c0, %c0_0] : memref<2x256xf32, #tpu.memory_space<vmem>>, vector<2x256xf32>
    %c0_1 = arith.constant 0 : index
    %c0_2 = arith.constant 0 : index
    %1 = vector.load %arg3[%c0_1, %c0_2] : memref<1x256xf32, #tpu.memory_space<vmem>>, vector<1x256xf32>
    %2 = vector.broadcast %1 : vector<1x256xf32> to vector<2x256xf32>
    %3 = arith.addf %0, %2 : vector<2x256xf32>
    %c0_3 = arith.constant 0 : index
    %c0_4 = arith.constant 0 : index
    %4 = vector.load %arg4[%c0_3, %c0_4] : memref<2x256xf32, #tpu.memory_space<vmem>>, vector<2x256xf32>
    tpu.vector_store %arg4[%c0_3, %c0_4], %3 {strides = array<i32>} : memref<2x256xf32, #tpu.memory_space<vmem>>, vector<2x256xf32>,
    return
  }
  func.func @transform_0(%arg0: i32, %arg1: i32) -> (i32, i32) {
    %c0_i32 = arith.constant 0 : i32
    return %arg1, %arg0 : i32, i32
  }
  func.func @transform_1(%arg0: i32, %arg1: i32) -> (i32, i32) {
    %c0_i32 = arith.constant 0 : i32
    %c0_i32_0 = arith.constant 0 : i32
    return %c0_i32, %arg0 : i32, i32
  }
  func.func @transform_2(%arg0: i32, %arg1: i32) -> (i32, i32) {
    %c0_i32 = arith.constant 0 : i32
    return %arg1, %arg0 : i32, i32
  }
}

</mosaic_0001>

<llo_original>
// kernel: tpu_custom_call.1
$region0: #{tpu_custom_call.1}
  #allocation0 [shape = 'u32[]', space=smem, size = 0x4, offset = 0x4, fixed_abs, tag = 'smem constant byte address 0x4 - core index']
  #allocation1 [shape = 'u32[144,128]{1,0:T(1,128)}', space=vmem, size = 0x12000, scoped, tag = 'internal scratch']
  %s0 = inlined_call_operand.hbm [shape: f32[2,256], index: 0, kind: input, shape index: {}]
  %s1 = inlined_call_operand.hbm [shape: f32[1,16000], index: 1, kind: input, shape index: {}]
  %s2 = inlined_call_operand.hbm [shape: f32[2,256], index: 2, kind: output, shape index: {}]
  %s3 = sld [smem:[#allocation0]]
  $region26: #{tpu_custom_call.1} parent=0
    _
  %s5 = ssub.s32 1, %s3
  %s6 = scalar_select 0, %s5, %s3
  $region1: #{tpu_custom_call.1} parent=0
    #allocation2 [shape = 'u8[2048]{0}', space=vmem, size = 0x800, scoped, tag = 'input window, operand 0, single buffered']
    #allocation3 [shape = 's32[1]{0}', space=sflag, size = 0x4, scoped, tag = 'scoped memory for tpu_custom_call.1']
    #allocation4 [shape = 's32[1]{0}', space=sflag, size = 0x4, scoped, tag = 'scoped memory for tpu_custom_call.1']
    #allocation5 [shape = 'u8[1024]{0}', space=vmem, size = 0x400, scoped, tag = 'input window, operand 1, single buffered']
    #allocation6 [shape = 's32[1]{0}', space=sflag, size = 0x4, scoped, tag = 'scoped memory for tpu_custom_call.1']
    #allocation7 [shape = 'u8[2048]{0}', space=vmem, size = 0x800, scoped, tag = 'output window, operand 0, single buffered']
    %7 = vsyncpa [#allocation3], 0
    %8 = vsyncpa [#allocation6], 0
    %9 = vsyncpa [#allocation4], 0
    // Predicated region
    $region2: #{tpu_custom_call.1} parent=1 // pred_check
      _
    $region3: #{tpu_custom_call.1} parent=1 // pred_check_branch
      %11 = sbr.rel (0) target = $region5
    $region4: #{tpu_custom_call.1} parent=1 // pred_region
      %s13 = ssub.s32 64, 64
      %14 = vsyncadd [#allocation3], %s13
      %s16 = sshll.u32 [#allocation2], 4
      %s17 = int_to_ptr.vmem [resolvable:$true] %s16
      %19 = dma.hbm_to_vmem [thread:$0]  %s0, 64, %s17, [#allocation3]
    $region5: #{tpu_custom_call.1} parent=1 // pred_fallthru
      _
    // Predicated region
    $region6: #{tpu_custom_call.1} parent=1 // pred_check
      _
    $region7: #{tpu_custom_call.1} parent=1 // pred_check_branch
      %21 = sbr.rel (0) target = $region9
    $region8: #{tpu_custom_call.1} parent=1 // pred_region
      %s23 = ssub.s32 32, 32
      %24 = vsyncadd [#allocation6], %s23
      %s26 = sshll.u32 [#allocation5], 4
      %s27 = int_to_ptr.vmem [resolvable:$true] %s26
      %29 = dma.hbm_to_vmem [thread:$0]  %s1, 32, %s27, [#allocation6]
    $region9: #{tpu_custom_call.1} parent=1 // pred_fallthru
      _
    // Predicated region
    $region10: #{tpu_custom_call.1} parent=1 // pred_check
      _
    $region11: #{tpu_custom_call.1} parent=1 // pred_check_branch
      %31 = sbr.rel (0) target = $region13
    $region12: #{tpu_custom_call.1} parent=1 // pred_region
      %32 = dma.done [#allocation3], 64
    $region13: #{tpu_custom_call.1} parent=1 // pred_fallthru
      _
    // Predicated region
    $region14: #{tpu_custom_call.1} parent=1 // pred_check
      _
    $region15: #{tpu_custom_call.1} parent=1 // pred_check_branch
      %34 = sbr.rel (0) target = $region17
    $region16: #{tpu_custom_call.1} parent=1 // pred_region
      %35 = dma.done [#allocation6], 32
    $region17: #{tpu_custom_call.1} parent=1 // pred_fallthru
      _
    %v36 = vld [vmem:[#allocation2] sm:$0xf]
    %v37 = vld [vmem:[#allocation5] sm:$0x3]
    %v39 = vlaneseq
    %v40 = vshrl.u32 %v39, 7
    %v41 = vsub.s32 0, %v40
    %v42 = vrot.slane %v37, %v41
    %v43 = vlaneseq
    %v44 = vshrl.u32 %v43, 7
    %v45 = vsub.s32 1, %v44
    %v46 = vrot.slane %v37, %v45
    %v47 = vcombine.low %v42, %v46
    %v49 = vunpack.c.l.s4 1983009808
    %v50 = vunpack.c.0.s8 %v49
    %v51 = vlaneseq
    %v52 = vshrl.u32 %v51, 7
    %v53 = vsub.s32 %v50, %v52
    %v54 = vrot.slane %v47, %v53
    %v56 = vadd.f32 %v36, %v54
    %57 = vst [vmem:[#allocation7] sm:$0xf] %v56
    // Predicated region
    $region18: #{tpu_custom_call.1} parent=1 // pred_check
      _
    $region19: #{tpu_custom_call.1} parent=1 // pred_check_branch
      %59 = sbr.rel (0) target = $region21
    $region20: #{tpu_custom_call.1} parent=1 // pred_region
      %s61 = ssub.s32 64, 64
      %62 = vsyncadd [#allocation4], %s61
      %s64 = sshll.u32 [#allocation7], 4
      %s65 = int_to_ptr.vmem [resolvable:$true] %s64
      %67 = dma.vmem_to_hbm [thread:$0]  %s65, 64, %s2, [#allocation4]
    $region21: #{tpu_custom_call.1} parent=1 // pred_fallthru
      _
    // Predicated region
    $region22: #{tpu_custom_call.1} parent=1 // pred_check
      _
    $region23: #{tpu_custom_call.1} parent=1 // pred_check_branch
      %69 = sbr.rel (0) target = $region25
    $region24: #{tpu_custom_call.1} parent=1 // pred_region
      %70 = dma.done [#allocation4], 64
    $region25: #{tpu_custom_call.1} parent=1 // pred_fallthru
      _
    %71 = vsyncpa [#allocation3], 1
    %72 = vsyncpa [#allocation6], 1
    %73 = vsyncpa [#allocation4], 1

</llo_original>
